<compile_context>
chip_gen: v6e
topology: v6e:2x2x1
jax: 0.10.0
libtpu: 0.0.40
codegen_flags: <defaults>
</compile_context>

<pallas_src>
import functools

import jax
import jax.numpy as jnp
from jax import lax
from jax.experimental import pallas as pl
from jax.experimental.pallas import tpu as pltpu


# ----------------------------------------------------------------------------
# Fused kernel: [ChebConv -> BN -> ReLU] x 2, everything resident in VMEM.
# Internal layout: rows = (padded) channels, lanes = b*V + v (lane-major).
# ----------------------------------------------------------------------------
def _fused_cheb_bn2_kernel(x_ref, lapT_ref, w1_ref, gb1_ref, w2_ref, gb2_ref,
                           o_ref, *, B, V, K, eps):
    lapT = lapT_ref[...]              # (V, V), already in compute dtype (bf16/f32)
    cd = lapT.dtype

    def cheb_bn_relu(x_f32, w_ref, gb_ref):
        c_pad = x_f32.shape[0]

        # ---- Chebyshev recurrence per batch (lane-aligned V-wide slices).
        #      T_k stay traced f32 values; the (K*c_pad, B*V) slab is built by
        #      granule-aligned concatenation and cast ONCE for the MXU.
        slabs = []
        for b in range(B):            # TODO(synk): fold into a grid/fori once B grows
            t_prev = x_f32[:, b * V:(b + 1) * V]          # (c_pad, V) f32
            ts = [t_prev]
            if K > 1:
                t_cur = jnp.dot(t_prev.astype(cd), lapT,
                                preferred_element_type=jnp.float32)
                ts.append(t_cur)
                for _ in range(2, K):
                    t_next = 2.0 * jnp.dot(t_cur.astype(cd), lapT,
                                           preferred_element_type=jnp.float32) - t_prev
                    t_prev, t_cur = t_cur, t_next
                    ts.append(t_cur)
            slabs.append(jnp.concatenate(ts, axis=0))     # (K*c_pad, V) f32
        slab = jnp.concatenate(slabs, axis=1).astype(cd)  # (K*c_pad, B*V) lane-major

        # ---- Weight contraction: ONE MXU dot, f32 accumulation.
        #      (ChebConv bias dropped: cancels exactly in training-mode BN.)
        wT = w_ref[...]                                   # (co_pad, K*c_pad) cd
        pre = jnp.dot(wT, slab,
                      preferred_element_type=jnp.float32)  # (co_pad, B*V) f32

        # ---- BatchNorm (training batch stats, biased var, per channel) + ReLU.
        co_pad = wT.shape[0]
        gb = gb_ref[...].astype(jnp.float32)              # (2*co_pad, 1)
        gamma, beta = gb[:co_pad, :], gb[co_pad:, :]
        inv_n = 1.0 / float(B * V)
        mean = jnp.sum(pre, axis=1, keepdims=True) * inv_n
        var = jnp.sum((pre - mean) ** 2, axis=1, keepdims=True) * inv_n   # two-pass
        scale = lax.rsqrt(var + eps) * gamma
        shift = beta - mean * scale
        return jnp.maximum(pre * scale + shift, 0.0)      # (co_pad, B*V) f32

    x = x_ref[...].astype(jnp.float32)
    y1 = cheb_bn_relu(x, w1_ref, gb1_ref)                 # block 1 (traced, no scratch)
    o_ref[...] = cheb_bn_relu(y1, w2_ref, gb2_ref).astype(o_ref.dtype)   # block 2


# ----------------------------------------------------------------------------
# Wrapper: layout plumbing (transpose / pad / reshape) done in XLA outside.
# ----------------------------------------------------------------------------
def _round_up(n, m=8):
    return ((n + m - 1) // m) * m


def spherical_cheb_bn2(x, lap, params1, params2, *, eps=1e-5,
                       compute_dtype=jnp.bfloat16):
    """x: (B, V, Cin); lap: (V, V); params*: dicts with weight/bias/gamma/beta."""
    B, V, c_in = x.shape
    K, _, c_mid = params1["weight"].shape
    _, _, c_out = params2["weight"].shape

    c_in_p = _round_up(c_in)
    c_mid_p = _round_up(c_mid)
    c_out_p = _round_up(c_out)

    # Internal layout: rows = padded channels, lanes = b*V + v.
    x_int = jnp.transpose(x, (2, 0, 1)).reshape(c_in, B * V)
    x_int = jnp.pad(x_int, ((0, c_in_p - c_in), (0, 0)))
    # Right-multiplication form of the Laplacian matmul: T_k = T_{k-1} @ lap^T.
    lapT = lap.T.astype(compute_dtype)

    def prep(p, ci_p, co_p):
        ci, co = p["weight"].shape[1], p["weight"].shape[2]
        w = jnp.pad(p["weight"], ((0, 0), (0, ci_p - ci), (0, co_p - co)))
        # wT[o, k*ci_p + c] = weight[k, c, o]  -> single K*ci_p-deep contraction.
        wT = jnp.transpose(w, (2, 0, 1)).reshape(co_p, K * ci_p).astype(compute_dtype)
        gamma = jnp.pad(p["gamma"], (0, co_p - co)).reshape(co_p, 1)
        beta = jnp.pad(p["beta"], (0, co_p - co)).reshape(co_p, 1)
        gb = jnp.concatenate([gamma, beta], axis=0).astype(jnp.float32)
        return wT, gb    # ChebConv bias intentionally not passed (cancels in BN).

    w1, gb1 = prep(params1, c_in_p, c_mid_p)
    w2, gb2 = prep(params2, c_mid_p, c_out_p)

    kernel = functools.partial(_fused_cheb_bn2_kernel, B=B, V=V, K=K, eps=eps)

    out_int = pl.pallas_call(
        kernel,
        out_shape=jax.ShapeDtypeStruct((c_out_p, B * V), jnp.float32),
        grid=(1,),
        in_specs=[
            pl.BlockSpec((c_in_p, B * V), lambda i: (0, 0)),
            pl.BlockSpec((V, V), lambda i: (0, 0)),
            pl.BlockSpec((c_mid_p, K * c_in_p), lambda i: (0, 0)),
            pl.BlockSpec((2 * c_mid_p, 1), lambda i: (0, 0)),
            pl.BlockSpec((c_out_p, K * c_mid_p), lambda i: (0, 0)),
            pl.BlockSpec((2 * c_out_p, 1), lambda i: (0, 0)),
        ],
        out_specs=pl.BlockSpec((c_out_p, B * V), lambda i: (0, 0)),
        compiler_params=pltpu.CompilerParams(
            dimension_semantics=("arbitrary",),
            vmem_limit_bytes=32 * 1024 * 1024),
    )(x_int, lapT, w1, gb1, w2, gb2)

    # Back to the module's (batch, vertices, channels) layout; drop channel padding.
    return jnp.transpose(out_int.reshape(c_out_p, B, V)[:c_out], (1, 2, 0))


# ----------------------------------------------------------------------------
# Pure-JAX reference (parameterized by compute dtype so the bf16 MXU path can
# be checked against a precision-matched reference).  Keeps the ChebConv bias,
# matching the PyTorch module; the kernel drops it since it cancels in BN.
# ----------------------------------------------------------------------------
def _forward_ref(x, lap, params1, params2, *, eps=1e-5,
                 compute_dtype=jnp.float32):
    lap_c = lap.astype(compute_dtype)

    def block(xb, p):
        K = p["weight"].shape[0]
        w_c = p["weight"].astype(compute_dtype)
        t_prev = xb                                   # f32 (B, V, C)
        ts = [t_prev.astype(compute_dtype)]
        if K > 1:
            t_cur = jnp.einsum("uv,bvc->buc", lap_c, ts[0],
                               preferred_element_type=jnp.float32)
            ts.append(t_cur.astype(compute_dtype))
            for _ in range(2, K):
                t_next = 2.0 * jnp.einsum("uv,bvc->buc", lap_c, ts[-1],
                                          preferred_element_type=jnp.float32) - t_prev
                t_prev, t_cur = t_cur, t_next
                ts.append(t_cur.astype(compute_dtype))
        pre = sum(jnp.einsum("bvc,co->bvo", ts[k], w_c[k],
                             preferred_element_type=jnp.float32)
                  for k in range(K))
        pre = pre + p["bias"][None, None, :]
        mean = jnp.mean(pre, axis=(0, 1), keepdims=True)
        var = jnp.mean((pre - mean) ** 2, axis=(0, 1), keepdims=True)
        y = (pre - mean) * lax.rsqrt(var + eps) * p["gamma"][None, None, :] \
            + p["beta"][None, None, :]
        return jnp.maximum(y, 0.0)

    return block(block(x, params1), params2)


def _block_params(key, in_ch, out_ch, K):
    kw, kb = jax.random.split(key)
    std = (2.0 / (in_ch * K)) ** 0.5          # kaiming-style init used by ChebConv
    return {
        "weight": std * jax.random.normal(kw, (K, in_ch, out_ch), jnp.float32),
        "bias": 0.01 * jax.random.normal(kb, (out_ch,), jnp.float32),
        "gamma": jnp.ones((out_ch,), jnp.float32),   # nn.BatchNorm1d defaults
        "beta": jnp.zeros((out_ch,), jnp.float32),
    }


if __name__ == "__main__":
    # Small, deterministic problem:
    #   batch=2, vertices=128, in_channels=4, middle_channels=8, out_channels=6, K=3
    B, V = 2, 128
    C_IN, C_MID, C_OUT = 4, 8, 6
    K = 3

    key = jax.random.PRNGKey(0)
    kx, kl, k1, k2 = jax.random.split(key, 4)

    x = jax.random.normal(kx, (B, V, C_IN), jnp.float32)

    # Deterministic dense, symmetric, rescaled laplacian-like operator.
    A = jax.random.normal(kl, (V, V), jnp.float32)
    lap = (A + A.T) / (2.0 * V ** 0.5)

    params1 = _block_params(k1, C_IN, C_MID, K)
    params2 = _block_params(k2, C_MID, C_OUT, K)

    # 1) Exact-semantics check: f32 compute path vs. pure-f32 reference.
    out_f32 = spherical_cheb_bn2(x, lap, params1, params2,
                                 compute_dtype=jnp.float32)
    out_f32 = jax.block_until_ready(out_f32)
    ref_f32 = _forward_ref(x, lap, params1, params2,
                           compute_dtype=jnp.float32)
    assert out_f32.shape == (B, V, C_OUT), out_f32.shape
    assert jnp.allclose(out_f32, ref_f32, rtol=1e-3, atol=1e-3), \
        float(jnp.max(jnp.abs(out_f32 - ref_f32)))

    # 2) Default (bf16 MXU operands, f32 accumulation) path vs. a
    #    precision-matched reference.
    out_bf = spherical_cheb_bn2(x, lap, params1, params2)
    out_bf = jax.block_until_ready(out_bf)
    ref_bf = _forward_ref(x, lap, params1, params2,
                          compute_dtype=jnp.bfloat16)
    assert out_bf.shape == (B, V, C_OUT), out_bf.shape
    assert jnp.allclose(out_bf, ref_bf, rtol=5e-3, atol=5e-3), \
        float(jnp.max(jnp.abs(out_bf - ref_bf)))

    print("KERNEL_OK")
</pallas_src>

<mosaic_0001>
module attributes {stable_mosaic.version = 11 : i64} {
  func.func @_fused_cheb_bn2_kernel(%arg0: i32, %arg1: memref<8x256xf32, #tpu.memory_space<vmem>>, %arg2: memref<128x128xf32, #tpu.memory_space<vmem>>, %arg3: memref<8x24xf32, #tpu.memory_space<vmem>>, %arg4: memref<16x1xf32, #tpu.memory_space<vmem>>, %arg5: memref<8x24xf32, #tpu.memory_space<vmem>>, %arg6: memref<16x1xf32, #tpu.memory_space<vmem>>, %arg7: memref<8x256xf32, #tpu.memory_space<vmem>>) attributes {dimension_semantics = [#tpu.dimension_semantics<arbitrary>], iteration_bounds = array<i64: 1>, scalar_prefetch = 0 : i64, scratch_operands = 0 : i64, tpu.core_type = #tpu.core_type<tc>, window_params = [{pipeline_mode = #tpu.pipeline_mode<synchronous>, transform_indices = @transform_0, window_bounds = array<i64: 8, 256>}, {pipeline_mode = #tpu.pipeline_mode<synchronous>, transform_indices = @transform_1, window_bounds = array<i64: 128, 128>}, {pipeline_mode = #tpu.pipeline_mode<synchronous>, transform_indices = @transform_2, window_bounds = array<i64: 8, 24>}, {pipeline_mode = #tpu.pipeline_mode<synchronous>, transform_indices = @transform_3, window_bounds = array<i64: 16, 1>}, {pipeline_mode = #tpu.pipeline_mode<synchronous>, transform_indices = @transform_4, window_bounds = array<i64: 8, 24>}, {pipeline_mode = #tpu.pipeline_mode<synchronous>, transform_indices = @transform_5, window_bounds = array<i64: 16, 1>}, {pipeline_mode = #tpu.pipeline_mode<synchronous>, transform_indices = @transform_6, window_bounds = array<i64: 8, 256>}]} {
    %c0 = arith.constant 0 : index
    %c0_0 = arith.constant 0 : index
    %0 = vector.load %arg2[%c0, %c0_0] : memref<128x128xf32, #tpu.memory_space<vmem>>, vector<128x128xf32>
    %c0_1 = arith.constant 0 : index
    %c0_2 = arith.constant 0 : index
    %1 = vector.load %arg1[%c0_1, %c0_2] : memref<8x256xf32, #tpu.memory_space<vmem>>, vector<8x256xf32>
    %2 = vector.extract_strided_slice %1 {offsets = [0, 0], sizes = [8, 128], strides = [1, 1]} : vector<8x256xf32> to vector<8x128xf32>
    %cst = arith.constant dense<0.000000e+00> : vector<8x128xf32>
    %3 = tpu.matmul %2, %0, %cst {dimension_numbers = #tpu.dot_dimension_numbers<[1], [0], [0], [1], [0, 0, 1, 1], [], []>} : vector<8x128xf32>, vector<128x128xf32>, vector<8x128xf32> -> vector<8x128xf32>
    %cst_3 = arith.constant dense<0.000000e+00> : vector<8x128xf32>
    %4 = tpu.matmul %3, %0, %cst_3 {dimension_numbers = #tpu.dot_dimension_numbers<[1], [0], [0], [1], [0, 0, 1, 1], [], []>} : vector<8x128xf32>, vector<128x128xf32>, vector<8x128xf32> -> vector<8x128xf32>
    %cst_4 = arith.constant 2.000000e+00 : f32
    %5 = vector.broadcast %cst_4 : f32 to vector<8x128xf32>
    %6 = arith.mulf %5, %4 : vector<8x128xf32>
    %7 = arith.subf %6, %2 : vector<8x128xf32>
    %8 = tpu.concatenate %2, %3, %7 in 0 : vector<8x128xf32>, vector<8x128xf32>, vector<8x128xf32> -> vector<24x128xf32>
    %9 = vector.extract_strided_slice %1 {offsets = [0, 128], sizes = [8, 128], strides = [1, 1]} : vector<8x256xf32> to vector<8x128xf32>
    %cst_5 = arith.constant dense<0.000000e+00> : vector<8x128xf32>
    %10 = tpu.matmul %9, %0, %cst_5 {dimension_numbers = #tpu.dot_dimension_numbers<[1], [0], [0], [1], [0, 0, 1, 1], [], []>} : vector<8x128xf32>, vector<128x128xf32>, vector<8x128xf32> -> vector<8x128xf32>
    %cst_6 = arith.constant dense<0.000000e+00> : vector<8x128xf32>
    %11 = tpu.matmul %10, %0, %cst_6 {dimension_numbers = #tpu.dot_dimension_numbers<[1], [0], [0], [1], [0, 0, 1, 1], [], []>} : vector<8x128xf32>, vector<128x128xf32>, vector<8x128xf32> -> vector<8x128xf32>
    %cst_7 = arith.constant 2.000000e+00 : f32
    %12 = vector.broadcast %cst_7 : f32 to vector<8x128xf32>
    %13 = arith.mulf %12, %11 : vector<8x128xf32>
    %14 = arith.subf %13, %9 : vector<8x128xf32>
    %15 = tpu.concatenate %9, %10, %14 in 0 : vector<8x128xf32>, vector<8x128xf32>, vector<8x128xf32> -> vector<24x128xf32>
    %16 = tpu.concatenate %8, %15 in 1 : vector<24x128xf32>, vector<24x128xf32> -> vector<24x256xf32>
    %c0_8 = arith.constant 0 : index
    %c0_9 = arith.constant 0 : index
    %17 = vector.load %arg3[%c0_8, %c0_9] : memref<8x24xf32, #tpu.memory_space<vmem>>, vector<8x24xf32>
    %cst_10 = arith.constant dense<0.000000e+00> : vector<8x256xf32>
    %18 = tpu.matmul %17, %16, %cst_10 {dimension_numbers = #tpu.dot_dimension_numbers<[1], [0], [0], [1], [0, 0, 1, 1], [], []>} : vector<8x24xf32>, vector<24x256xf32>, vector<8x256xf32> -> vector<8x256xf32>
    %c0_11 = arith.constant 0 : index
    %c0_12 = arith.constant 0 : index
    %19 = vector.load %arg4[%c0_11, %c0_12] : memref<16x1xf32, #tpu.memory_space<vmem>>, vector<16x1xf32>
    %20 = vector.extract_strided_slice %19 {offsets = [0, 0], sizes = [8, 1], strides = [1, 1]} : vector<16x1xf32> to vector<8x1xf32>
    %21 = vector.extract_strided_slice %19 {offsets = [8, 0], sizes = [8, 1], strides = [1, 1]} : vector<16x1xf32> to vector<8x1xf32>
    %cst_13 = arith.constant dense<0.000000e+00> : vector<8xf32>
    %22 = vector.multi_reduction <add>, %18, %cst_13 [1] : vector<8x256xf32> to vector<8xf32>
    %23 = vector.shape_cast %22 : vector<8xf32> to vector<8x1xf32>
    %cst_14 = arith.constant 3.906250e-03 : f32
    %24 = vector.broadcast %cst_14 : f32 to vector<8x1xf32>
    %25 = arith.mulf %23, %24 : vector<8x1xf32>
    %26 = vector.broadcast %25 : vector<8x1xf32> to vector<8x256xf32>
    %27 = arith.subf %18, %26 : vector<8x256xf32>
    %28 = arith.mulf %27, %27 : vector<8x256xf32>
    %cst_15 = arith.constant dense<0.000000e+00> : vector<8xf32>
    %29 = vector.multi_reduction <add>, %28, %cst_15 [1] : vector<8x256xf32> to vector<8xf32>
    %30 = vector.shape_cast %29 : vector<8xf32> to vector<8x1xf32>
    %cst_16 = arith.constant 3.906250e-03 : f32
    %31 = vector.broadcast %cst_16 : f32 to vector<8x1xf32>
    %32 = arith.mulf %30, %31 : vector<8x1xf32>
    %cst_17 = arith.constant 9.99999974E-6 : f32
    %33 = vector.broadcast %cst_17 : f32 to vector<8x1xf32>
    %34 = arith.addf %32, %33 : vector<8x1xf32>
    %35 = math.rsqrt %34 : vector<8x1xf32>
    %36 = arith.mulf %35, %20 : vector<8x1xf32>
    %37 = arith.mulf %25, %36 : vector<8x1xf32>
    %38 = arith.subf %21, %37 : vector<8x1xf32>
    %39 = vector.broadcast %36 : vector<8x1xf32> to vector<8x256xf32>
    %40 = arith.mulf %18, %39 : vector<8x256xf32>
    %41 = vector.broadcast %38 : vector<8x1xf32> to vector<8x256xf32>
    %42 = arith.addf %40, %41 : vector<8x256xf32>
    %cst_18 = arith.constant 0.000000e+00 : f32
    %43 = vector.broadcast %cst_18 : f32 to vector<8x256xf32>
    %44 = arith.maximumf %42, %43 : vector<8x256xf32>
    %45 = vector.extract_strided_slice %44 {offsets = [0, 0], sizes = [8, 128], strides = [1, 1]} : vector<8x256xf32> to vector<8x128xf32>
    %cst_19 = arith.constant dense<0.000000e+00> : vector<8x128xf32>
    %46 = tpu.matmul %45, %0, %cst_19 {dimension_numbers = #tpu.dot_dimension_numbers<[1], [0], [0], [1], [0, 0, 1, 1], [], []>} : vector<8x128xf32>, vector<128x128xf32>, vector<8x128xf32> -> vector<8x128xf32>
    %cst_20 = arith.constant dense<0.000000e+00> : vector<8x128xf32>
    %47 = tpu.matmul %46, %0, %cst_20 {dimension_numbers = #tpu.dot_dimension_numbers<[1], [0], [0], [1], [0, 0, 1, 1], [], []>} : vector<8x128xf32>, vector<128x128xf32>, vector<8x128xf32> -> vector<8x128xf32>
    %cst_21 = arith.constant 2.000000e+00 : f32
    %48 = vector.broadcast %cst_21 : f32 to vector<8x128xf32>
    %49 = arith.mulf %48, %47 : vector<8x128xf32>
    %50 = arith.subf %49, %45 : vector<8x128xf32>
    %51 = tpu.concatenate %45, %46, %50 in 0 : vector<8x128xf32>, vector<8x128xf32>, vector<8x128xf32> -> vector<24x128xf32>
    %52 = vector.extract_strided_slice %44 {offsets = [0, 128], sizes = [8, 128], strides = [1, 1]} : vector<8x256xf32> to vector<8x128xf32>
    %cst_22 = arith.constant dense<0.000000e+00> : vector<8x128xf32>
    %53 = tpu.matmul %52, %0, %cst_22 {dimension_numbers = #tpu.dot_dimension_numbers<[1], [0], [0], [1], [0, 0, 1, 1], [], []>} : vector<8x128xf32>, vector<128x128xf32>, vector<8x128xf32> -> vector<8x128xf32>
    %cst_23 = arith.constant dense<0.000000e+00> : vector<8x128xf32>
    %54 = tpu.matmul %53, %0, %cst_23 {dimension_numbers = #tpu.dot_dimension_numbers<[1], [0], [0], [1], [0, 0, 1, 1], [], []>} : vector<8x128xf32>, vector<128x128xf32>, vector<8x128xf32> -> vector<8x128xf32>
    %cst_24 = arith.constant 2.000000e+00 : f32
    %55 = vector.broadcast %cst_24 : f32 to vector<8x128xf32>
    %56 = arith.mulf %55, %54 : vector<8x128xf32>
    %57 = arith.subf %56, %52 : vector<8x128xf32>
    %58 = tpu.concatenate %52, %53, %57 in 0 : vector<8x128xf32>, vector<8x128xf32>, vector<8x128xf32> -> vector<24x128xf32>
    %59 = tpu.concatenate %51, %58 in 1 : vector<24x128xf32>, vector<24x128xf32> -> vector<24x256xf32>
    %c0_25 = arith.constant 0 : index
    %c0_26 = arith.constant 0 : index
    %60 = vector.load %arg5[%c0_25, %c0_26] : memref<8x24xf32, #tpu.memory_space<vmem>>, vector<8x24xf32>
    %cst_27 = arith.constant dense<0.000000e+00> : vector<8x256xf32>
    %61 = tpu.matmul %60, %59, %cst_27 {dimension_numbers = #tpu.dot_dimension_numbers<[1], [0], [0], [1], [0, 0, 1, 1], [], []>} : vector<8x24xf32>, vector<24x256xf32>, vector<8x256xf32> -> vector<8x256xf32>
    %c0_28 = arith.constant 0 : index
    %c0_29 = arith.constant 0 : index
    %62 = vector.load %arg6[%c0_28, %c0_29] : memref<16x1xf32, #tpu.memory_space<vmem>>, vector<16x1xf32>
    %63 = vector.extract_strided_slice %62 {offsets = [0, 0], sizes = [8, 1], strides = [1, 1]} : vector<16x1xf32> to vector<8x1xf32>
    %64 = vector.extract_strided_slice %62 {offsets = [8, 0], sizes = [8, 1], strides = [1, 1]} : vector<16x1xf32> to vector<8x1xf32>
    %cst_30 = arith.constant dense<0.000000e+00> : vector<8xf32>
    %65 = vector.multi_reduction <add>, %61, %cst_30 [1] : vector<8x256xf32> to vector<8xf32>
    %66 = vector.shape_cast %65 : vector<8xf32> to vector<8x1xf32>
    %cst_31 = arith.constant 3.906250e-03 : f32
    %67 = vector.broadcast %cst_31 : f32 to vector<8x1xf32>
    %68 = arith.mulf %66, %67 : vector<8x1xf32>
    %69 = vector.broadcast %68 : vector<8x1xf32> to vector<8x256xf32>
    %70 = arith.subf %61, %69 : vector<8x256xf32>
    %71 = arith.mulf %70, %70 : vector<8x256xf32>
    %cst_32 = arith.constant dense<0.000000e+00> : vector<8xf32>
    %72 = vector.multi_reduction <add>, %71, %cst_32 [1] : vector<8x256xf32> to vector<8xf32>
    %73 = vector.shape_cast %72 : vector<8xf32> to vector<8x1xf32>
    %cst_33 = arith.constant 3.906250e-03 : f32
    %74 = vector.broadcast %cst_33 : f32 to vector<8x1xf32>
    %75 = arith.mulf %73, %74 : vector<8x1xf32>
    %cst_34 = arith.constant 9.99999974E-6 : f32
    %76 = vector.broadcast %cst_34 : f32 to vector<8x1xf32>
    %77 = arith.addf %75, %76 : vector<8x1xf32>
    %78 = math.rsqrt %77 : vector<8x1xf32>
    %79 = arith.mulf %78, %63 : vector<8x1xf32>
    %80 = arith.mulf %68, %79 : vector<8x1xf32>
    %81 = arith.subf %64, %80 : vector<8x1xf32>
    %82 = vector.broadcast %79 : vector<8x1xf32> to vector<8x256xf32>
    %83 = arith.mulf %61, %82 : vector<8x256xf32>
    %84 = vector.broadcast %81 : vector<8x1xf32> to vector<8x256xf32>
    %85 = arith.addf %83, %84 : vector<8x256xf32>
    %cst_35 = arith.constant 0.000000e+00 : f32
    %86 = vector.broadcast %cst_35 : f32 to vector<8x256xf32>
    %87 = arith.maximumf %85, %86 : vector<8x256xf32>
    %c0_36 = arith.constant 0 : index
    %c0_37 = arith.constant 0 : index
    %88 = vector.load %arg7[%c0_36, %c0_37] : memref<8x256xf32, #tpu.memory_space<vmem>>, vector<8x256xf32>
    tpu.vector_store %arg7[%c0_36, %c0_37], %87 {strides = array<i32>} : memref<8x256xf32, #tpu.memory_space<vmem>>, vector<8x256xf32>,
    return
  }
  func.func @transform_0(%arg0: i32) -> (i32, i32) {
    %c0_i32 = arith.constant 0 : i32
    %c0_i32_0 = arith.constant 0 : i32
    %c0_i32_1 = arith.constant 0 : i32
    return %c0_i32, %c0_i32_0 : i32, i32
  }
  func.func @transform_1(%arg0: i32) -> (i32, i32) {
    %c0_i32 = arith.constant 0 : i32
    %c0_i32_0 = arith.constant 0 : i32
    %c0_i32_1 = arith.constant 0 : i32
    return %c0_i32, %c0_i32_0 : i32, i32
  }
  func.func @transform_2(%arg0: i32) -> (i32, i32) {
    %c0_i32 = arith.constant 0 : i32
    %c0_i32_0 = arith.constant 0 : i32
    %c0_i32_1 = arith.constant 0 : i32
    return %c0_i32, %c0_i32_0 : i32, i32
  }
  func.func @transform_3(%arg0: i32) -> (i32, i32) {
    %c0_i32 = arith.constant 0 : i32
    %c0_i32_0 = arith.constant 0 : i32
    %c0_i32_1 = arith.constant 0 : i32
    return %c0_i32, %c0_i32_0 : i32, i32
  }
  func.func @transform_4(%arg0: i32) -> (i32, i32) {
    %c0_i32 = arith.constant 0 : i32
    %c0_i32_0 = arith.constant 0 : i32
    %c0_i32_1 = arith.constant 0 : i32
    return %c0_i32, %c0_i32_0 : i32, i32
  }
  func.func @transform_5(%arg0: i32) -> (i32, i32) {
    %c0_i32 = arith.constant 0 : i32
    %c0_i32_0 = arith.constant 0 : i32
    %c0_i32_1 = arith.constant 0 : i32
    return %c0_i32, %c0_i32_0 : i32, i32
  }
  func.func @transform_6(%arg0: i32) -> (i32, i32) {
    %c0_i32 = arith.constant 0 : i32
    %c0_i32_0 = arith.constant 0 : i32
    %c0_i32_1 = arith.constant 0 : i32
    return %c0_i32, %c0_i32_0 : i32, i32
  }
}

</mosaic_0001>

<llo_original>
// kernel: tpu_custom_call.1
$region0: #{tpu_custom_call.1}
  #allocation0 [shape = 'u32[]', space=smem, size = 0x4, offset = 0x4, fixed_abs, tag = 'smem constant byte address 0x4 - core index']
  #allocation1 [shape = 'u32[144,128]{1,0:T(1,128)}', space=vmem, size = 0x12000, scoped, tag = 'internal scratch']
  %s0 = inlined_call_operand.vmem [shape: f32[8,256], index: 0, kind: input, shape index: {}]
  %s1 = inlined_call_operand.hbm [shape: f32[128,128], index: 1, kind: input, shape index: {}]
  %s2 = inlined_call_operand.vmem [shape: f32[8,24], index: 2, kind: input, shape index: {}]
  %s3 = inlined_call_operand.vmem [shape: f32[16,1], index: 3, kind: input, shape index: {}]
  %s4 = inlined_call_operand.vmem [shape: f32[8,24], index: 4, kind: input, shape index: {}]
  %s5 = inlined_call_operand.vmem [shape: f32[16,1], index: 5, kind: input, shape index: {}]
  %s6 = inlined_call_operand.hbm [shape: f32[8,256], index: 6, kind: output, shape index: {}]
  %s7 = sld [smem:[#allocation0]]
  $region38: #{tpu_custom_call.1} parent=0
    _
  %s9 = ssub.s32 1, %s7
  %s10 = scalar_select 0, %s9, %s7
  $region1: #{tpu_custom_call.1} parent=0
    #allocation2 [shape = 'u8[65536]{0}', space=vmem, size = 0x10000, scoped, tag = 'input window, operand 1, single buffered']
    #allocation3 [shape = 's32[1]{0}', space=sflag, size = 0x4, scoped, tag = 'scoped memory for tpu_custom_call.1']
    #allocation4 [shape = 's32[1]{0}', space=sflag, size = 0x4, scoped, tag = 'scoped memory for tpu_custom_call.1']
    #allocation5 [shape = 'u8[8192]{0}', space=vmem, size = 0x2000, scoped, tag = 'output window, operand 0, single buffered']
    %11 = vsyncpa [#allocation3], 0
    %12 = vsyncpa [#allocation4], 0
    // Predicated region
    $region2: #{tpu_custom_call.1} parent=1 // pred_check
      _
    $region3: #{tpu_custom_call.1} parent=1 // pred_check_branch
      %14 = sbr.rel (0) target = $region5
    $region4: #{tpu_custom_call.1} parent=1 // pred_region
      _
    $region5: #{tpu_custom_call.1} parent=1 // pred_fallthru
      _
    // Predicated region
    $region6: #{tpu_custom_call.1} parent=1 // pred_check
      _
    $region7: #{tpu_custom_call.1} parent=1 // pred_check_branch
      %16 = sbr.rel (0) target = $region9
    $region8: #{tpu_custom_call.1} parent=1 // pred_region
      %s18 = ssub.s32 2048, 2048
      %19 = vsyncadd [#allocation3], %s18
      %s20 = sshll.u32 [#allocation2], 4
      %s21 = int_to_ptr.vmem [resolvable:$true] %s20
      %26 = dma.hbm_to_vmem [thread:$0]  %s1, 2048, %s21, [#allocation3], 128, 128, 8
    $region9: #{tpu_custom_call.1} parent=1 // pred_fallthru
      _
    // Predicated region
    $region10: #{tpu_custom_call.1} parent=1 // pred_check
      _
    $region11: #{tpu_custom_call.1} parent=1 // pred_check_branch
      %28 = sbr.rel (0) target = $region13
    $region12: #{tpu_custom_call.1} parent=1 // pred_region
      _
    $region13: #{tpu_custom_call.1} parent=1 // pred_fallthru
      _
    // Predicated region
    $region14: #{tpu_custom_call.1} parent=1 // pred_check
      _
    $region15: #{tpu_custom_call.1} parent=1 // pred_check_branch
      %30 = sbr.rel (0) target = $region17
    $region16: #{tpu_custom_call.1} parent=1 // pred_region
      _
    $region17: #{tpu_custom_call.1} parent=1 // pred_fallthru
      _
    // Predicated region
    $region18: #{tpu_custom_call.1} parent=1 // pred_check
      _
    $region19: #{tpu_custom_call.1} parent=1 // pred_check_branch
      %32 = sbr.rel (0) target = $region21
    $region20: #{tpu_custom_call.1} parent=1 // pred_region
      _
    $region21: #{tpu_custom_call.1} parent=1 // pred_fallthru
      _
    // Predicated region
    $region22: #{tpu_custom_call.1} parent=1 // pred_check
      _
    $region23: #{tpu_custom_call.1} parent=1 // pred_check_branch
      %34 = sbr.rel (0) target = $region25
    $region24: #{tpu_custom_call.1} parent=1 // pred_region
      _
    $region25: #{tpu_custom_call.1} parent=1 // pred_fallthru
      _
    // Predicated region
    $region26: #{tpu_custom_call.1} parent=1 // pred_check
      _
    $region27: #{tpu_custom_call.1} parent=1 // pred_check_branch
      %36 = sbr.rel (0) target = $region29
    $region28: #{tpu_custom_call.1} parent=1 // pred_region
      %37 = dma.done [#allocation3], 2048
    $region29: #{tpu_custom_call.1} parent=1 // pred_fallthru
      _
    %v38 = vld [vmem:[#allocation2] sm:$0xff]
    %v39 = vld [vmem:[#allocation2 + $0x8] sm:$0xff]
    %v40 = vld [vmem:[#allocation2 + $0x10] sm:$0xff]
    %v41 = vld [vmem:[#allocation2 + $0x18] sm:$0xff]
    %v42 = vld [vmem:[#allocation2 + $0x20] sm:$0xff]
    %v43 = vld [vmem:[#allocation2 + $0x28] sm:$0xff]
    %v44 = vld [vmem:[#allocation2 + $0x30] sm:$0xff]
    %v45 = vld [vmem:[#allocation2 + $0x38] sm:$0xff]
    %v46 = vld [vmem:[#allocation2 + $0x40] sm:$0xff]
    %v47 = vld [vmem:[#allocation2 + $0x48] sm:$0xff]
    %v48 = vld [vmem:[#allocation2 + $0x50] sm:$0xff]
    %v49 = vld [vmem:[#allocation2 + $0x58] sm:$0xff]
    %v50 = vld [vmem:[#allocation2 + $0x60] sm:$0xff]
    %v51 = vld [vmem:[#allocation2 + $0x68] sm:$0xff]
    %v52 = vld [vmem:[#allocation2 + $0x70] sm:$0xff]
    %v53 = vld [vmem:[#allocation2 + $0x78] sm:$0xff]
    %v54 = vld [vmem:[%s0] sm:$0xff]
    %v55 = vld [vmem:[%s0 + $0x8] sm:$0xff]
    %56 = vmatprep.subr.mxu0 0.0
    %57 = vmatpush1.msra.mxu0 %v53
    %58 = vmatprep.subr.mxu0 0.0
    %59 = vmatpush1.msra.mxu0 %v52
    %60 = vmatprep.subr.mxu0 0.0
    %61 = vmatpush1.msra.mxu0 %v51
    %62 = vmatprep.subr.mxu0 0.0
    %63 = vmatpush1.msra.mxu0 %v50
    %64 = vmatprep.subr.mxu0 0.0
    %65 = vmatpush1.msra.mxu0 %v49
    %66 = vmatprep.subr.mxu0 0.0
    %67 = vmatpush1.msra.mxu0 %v48
    %68 = vmatprep.subr.mxu0 0.0
    %69 = vmatpush1.msra.mxu0 %v47
    %70 = vmatprep.subr.mxu0 0.0
    %71 = vmatpush1.msra.mxu0 %v46
    %72 = vmatprep.subr.mxu0 0.0
    %73 = vmatpush1.msra.mxu0 %v45
    %74 = vmatprep.subr.mxu0 0.0
    %75 = vmatpush1.msra.mxu0 %v44
    %76 = vmatprep.subr.mxu0 0.0
    %77 = vmatpush1.msra.mxu0 %v43
    %78 = vmatprep.subr.mxu0 0.0
    %79 = vmatpush1.msra.mxu0 %v42
    %80 = vmatprep.subr.mxu0 0.0
    %81 = vmatpush1.msra.mxu0 %v41
    %82 = vmatprep.subr.mxu0 0.0
    %83 = vmatpush1.msra.mxu0 %v40
    %84 = vmatprep.subr.mxu0 0.0
    %85 = vmatpush1.msra.mxu0 %v39
    %86 = vmatprep.subr.mxu0 0.0
    %87 = vmatpush1.msra.mxu0 %v38
    %88 = vmatprep.subr.mxu0 0.0
    %89 = vmatpush2.msra.mxu0 0.0
    %90 = vmatprep.subr.mxu0 0.0
    %91 = vmatpush2.msra.mxu0 0.0
    %92 = vmatprep.subr.mxu0 0.0
    %93 = vmatpush2.msra.mxu0 0.0
    %94 = vmatprep.subr.mxu0 0.0
    %95 = vmatpush2.msra.mxu0 0.0
    %96 = vmatprep.subr.mxu0 0.0
    %97 = vmatpush2.msra.mxu0 0.0
    %98 = vmatprep.subr.mxu0 0.0
    %99 = vmatpush2.msra.mxu0 0.0
    %100 = vmatprep.subr.mxu0 0.0
    %101 = vmatpush2.msra.mxu0 0.0
    %102 = vmatprep.subr.mxu0 0.0
    %103 = vmatpush2.msra.mxu0 0.0
    %104 = vmatprep.subr.mxu0 0.0
    %105 = vmatpush2.msra.mxu0 0.0
    %106 = vmatprep.subr.mxu0 0.0
    %107 = vmatpush2.msra.mxu0 0.0
    %108 = vmatprep.subr.mxu0 0.0
    %109 = vmatpush2.msra.mxu0 0.0
    %110 = vmatprep.subr.mxu0 0.0
    %111 = vmatpush2.msra.mxu0 0.0
    %112 = vmatprep.subr.mxu0 0.0
    %113 = vmatpush2.msra.mxu0 0.0
    %114 = vmatprep.subr.mxu0 0.0
    %115 = vmatpush2.msra.mxu0 0.0
    %116 = vmatprep.subr.mxu0 0.0
    %117 = vmatpush2.msra.mxu0 0.0
    %118 = vmatprep.subr.mxu0 0.0
    %119 = vmatpush2.msra.mxu0 0.0
    %120 = vmatprep.mubr.f32.mxu0 0.0
    %121 = vmatmul.mubr.f32.gmra.mxu0 %v54
    %v122 = vpop.f32.mrf.mxu0
    %v123 = vadd.f32 0.0, %v122
    %v124 = vpop.f32.mrf.mxu0
    %125 = vdwg.mxu0
    %126 = vmatprep.subr.mxu0 0.0
    %127 = vmatpush1.msra.mxu0 %v53
    %128 = vmatprep.subr.mxu0 0.0
    %129 = vmatpush1.msra.mxu0 %v52
    %130 = vmatprep.subr.mxu0 0.0
    %131 = vmatpush1.msra.mxu0 %v51
    %132 = vmatprep.subr.mxu0 0.0
    %133 = vmatpush1.msra.mxu0 %v50
    %134 = vmatprep.subr.mxu0 0.0
    %135 = vmatpush1.msra.mxu0 %v49
    %136 = vmatprep.subr.mxu0 0.0
    %137 = vmatpush1.msra.mxu0 %v48
    %138 = vmatprep.subr.mxu0 0.0
    %139 = vmatpush1.msra.mxu0 %v47
    %140 = vmatprep.subr.mxu0 0.0
    %141 = vmatpush1.msra.mxu0 %v46
    %142 = vmatprep.subr.mxu0 0.0
    %143 = vmatpush1.msra.mxu0 %v45
    %144 = vmatprep.subr.mxu0 0.0
    %145 = vmatpush1.msra.mxu0 %v44
    %146 = vmatprep.subr.mxu0 0.0
    %147 = vmatpush1.msra.mxu0 %v43
    %148 = vmatprep.subr.mxu0 0.0
    %149 = vmatpush1.msra.mxu0 %v42
    %150 = vmatprep.subr.mxu0 0.0
    %151 = vmatpush1.msra.mxu0 %v41
    %152 = vmatprep.subr.mxu0 0.0
    %153 = vmatpush1.msra.mxu0 %v40
    %154 = vmatprep.subr.mxu0 0.0
    %155 = vmatpush1.msra.mxu0 %v39
    %156 = vmatprep.subr.mxu0 0.0
    %157 = vmatpush1.msra.mxu0 %v38
    %158 = vmatprep.subr.mxu0 0.0
    %159 = vmatpush2.msra.mxu0 0.0
    %160 = vmatprep.subr.mxu0 0.0
    %161 = vmatpush2.msra.mxu0 0.0
    %162 = vmatprep.subr.mxu0 0.0
    %163 = vmatpush2.msra.mxu0 0.0
    %164 = vmatprep.subr.mxu0 0.0
    %165 = vmatpush2.msra.mxu0 0.0
    %166 = vmatprep.subr.mxu0 0.0
    %167 = vmatpush2.msra.mxu0 0.0
    %168 = vmatprep.subr.mxu0 0.0
    %169 = vmatpush2.msra.mxu0 0.0
    %170 = vmatprep.subr.mxu0 0.0
    %171 = vmatpush2.msra.mxu0 0.0
    %172 = vmatprep.subr.mxu0 0.0
    %173 = vmatpush2.msra.mxu0 0.0
    %174 = vmatprep.subr.mxu0 0.0
    %175 = vmatpush2.msra.mxu0 0.0
    %176 = vmatprep.subr.mxu0 0.0
    %177 = vmatpush2.msra.mxu0 0.0
    %178 = vmatprep.subr.mxu0 0.0
    %179 = vmatpush2.msra.mxu0 0.0
    %180 = vmatprep.subr.mxu0 0.0
    %181 = vmatpush2.msra.mxu0 0.0
    %182 = vmatprep.subr.mxu0 0.0
    %183 = vmatpush2.msra.mxu0 0.0
    %184 = vmatprep.subr.mxu0 0.0
    %185 = vmatpush2.msra.mxu0 0.0
    %186 = vmatprep.subr.mxu0 0.0
    %187 = vmatpush2.msra.mxu0 0.0
    %188 = vmatprep.subr.mxu0 0.0
    %189 = vmatpush2.msra.mxu0 0.0
    %190 = vmatprep.mubr.f32.mxu0 0.0
    %191 = vmatmul.mubr.f32.gmra.mxu0 %v123
    %v192 = vpop.f32.mrf.mxu0
    %v193 = vadd.f32 0.0, %v192
    %v194 = vpop.f32.mrf.mxu0
    %195 = vdwg.mxu0
    %v196 = vmul.f32 %v193, 2.0
    %v197 = vsub.f32 %v196, %v54
    %198 = vmatprep.subr.mxu0 0.0
    %199 = vmatpush1.msra.mxu0 %v53
    %200 = vmatprep.subr.mxu0 0.0
    %201 = vmatpush1.msra.mxu0 %v52
    %202 = vmatprep.subr.mxu0 0.0
    %203 = vmatpush1.msra.mxu0 %v51
    %204 = vmatprep.subr.mxu0 0.0
    %205 = vmatpush1.msra.mxu0 %v50
    %206 = vmatprep.subr.mxu0 0.0
    %207 = vmatpush1.msra.mxu0 %v49
    %208 = vmatprep.subr.mxu0 0.0
    %209 = vmatpush1.msra.mxu0 %v48
    %210 = vmatprep.subr.mxu0 0.0
    %211 = vmatpush1.msra.mxu0 %v47
    %212 = vmatprep.subr.mxu0 0.0
    %213 = vmatpush1.msra.mxu0 %v46
    %214 = vmatprep.subr.mxu0 0.0
    %215 = vmatpush1.msra.mxu0 %v45
    %216 = vmatprep.subr.mxu0 0.0
    %217 = vmatpush1.msra.mxu0 %v44
    %218 = vmatprep.subr.mxu0 0.0
    %219 = vmatpush1.msra.mxu0 %v43
    %220 = vmatprep.subr.mxu0 0.0
    %221 = vmatpush1.msra.mxu0 %v42
    %222 = vmatprep.subr.mxu0 0.0
    %223 = vmatpush1.msra.mxu0 %v41
    %224 = vmatprep.subr.mxu0 0.0
    %225 = vmatpush1.msra.mxu0 %v40
    %226 = vmatprep.subr.mxu0 0.0
    %227 = vmatpush1.msra.mxu0 %v39
    %228 = vmatprep.subr.mxu0 0.0
    %229 = vmatpush1.msra.mxu0 %v38
    %230 = vmatprep.subr.mxu0 0.0
    %231 = vmatpush2.msra.mxu0 0.0
    %232 = vmatprep.subr.mxu0 0.0
    %233 = vmatpush2.msra.mxu0 0.0
    %234 = vmatprep.subr.mxu0 0.0
    %235 = vmatpush2.msra.mxu0 0.0
    %236 = vmatprep.subr.mxu0 0.0
    %237 = vmatpush2.msra.mxu0 0.0
    %238 = vmatprep.subr.mxu0 0.0
    %239 = vmatpush2.msra.mxu0 0.0
    %240 = vmatprep.subr.mxu0 0.0
    %241 = vmatpush2.msra.mxu0 0.0
    %242 = vmatprep.subr.mxu0 0.0
    %243 = vmatpush2.msra.mxu0 0.0
    %244 = vmatprep.subr.mxu0 0.0
    %245 = vmatpush2.msra.mxu0 0.0
    %246 = vmatprep.subr.mxu0 0.0
    %247 = vmatpush2.msra.mxu0 0.0
    %248 = vmatprep.subr.mxu0 0.0
    %249 = vmatpush2.msra.mxu0 0.0
    %250 = vmatprep.subr.mxu0 0.0
    %251 = vmatpush2.msra.mxu0 0.0
    %252 = vmatprep.subr.mxu0 0.0
    %253 = vmatpush2.msra.mxu0 0.0
    %254 = vmatprep.subr.mxu0 0.0
    %255 = vmatpush2.msra.mxu0 0.0
    %256 = vmatprep.subr.mxu0 0.0
    %257 = vmatpush2.msra.mxu0 0.0
    %258 = vmatprep.subr.mxu0 0.0
    %259 = vmatpush2.msra.mxu0 0.0
    %260 = vmatprep.subr.mxu0 0.0
    %261 = vmatpush2.msra.mxu0 0.0
    %262 = vmatprep.mubr.f32.mxu0 0.0
    %263 = vmatmul.mubr.f32.gmra.mxu0 %v55
    %v264 = vpop.f32.mrf.mxu0
    %v265 = vadd.f32 0.0, %v264
    %v266 = vpop.f32.mrf.mxu0
    %267 = vdwg.mxu0
    %268 = vmatprep.subr.mxu0 0.0
    %269 = vmatpush1.msra.mxu0 %v53
    %270 = vmatprep.subr.mxu0 0.0
    %271 = vmatpush1.msra.mxu0 %v52
    %272 = vmatprep.subr.mxu0 0.0
    %273 = vmatpush1.msra.mxu0 %v51
    %274 = vmatprep.subr.mxu0 0.0
    %275 = vmatpush1.msra.mxu0 %v50
    %276 = vmatprep.subr.mxu0 0.0
    %277 = vmatpush1.msra.mxu0 %v49
    %278 = vmatprep.subr.mxu0 0.0
    %279 = vmatpush1.msra.mxu0 %v48
    %280 = vmatprep.subr.mxu0 0.0
    %281 = vmatpush1.msra.mxu0 %v47
    %282 = vmatprep.subr.mxu0 0.0
    %283 = vmatpush1.msra.mxu0 %v46
    %284 = vmatprep.subr.mxu0 0.0
    %285 = vmatpush1.msra.mxu0 %v45
    %286 = vmatprep.subr.mxu0 0.0
    %287 = vmatpush1.msra.mxu0 %v44
    %288 = vmatprep.subr.mxu0 0.0
    %289 = vmatpush1.msra.mxu0 %v43
    %290 = vmatprep.subr.mxu0 0.0
    %291 = vmatpush1.msra.mxu0 %v42
    %292 = vmatprep.subr.mxu0 0.0
    %293 = vmatpush1.msra.mxu0 %v41
    %294 = vmatprep.subr.mxu0 0.0
    %295 = vmatpush1.msra.mxu0 %v40
    %296 = vmatprep.subr.mxu0 0.0
    %297 = vmatpush1.msra.mxu0 %v39
    %298 = vmatprep.subr.mxu0 0.0
    %299 = vmatpush1.msra.mxu0 %v38
    %300 = vmatprep.subr.mxu0 0.0
    %301 = vmatpush2.msra.mxu0 0.0
    %302 = vmatprep.subr.mxu0 0.0
    %303 = vmatpush2.msra.mxu0 0.0
    %304 = vmatprep.subr.mxu0 0.0
    %305 = vmatpush2.msra.mxu0 0.0
    %306 = vmatprep.subr.mxu0 0.0
    %307 = vmatpush2.msra.mxu0 0.0
    %308 = vmatprep.subr.mxu0 0.0
    %309 = vmatpush2.msra.mxu0 0.0
    %310 = vmatprep.subr.mxu0 0.0
    %311 = vmatpush2.msra.mxu0 0.0
    %312 = vmatprep.subr.mxu0 0.0
    %313 = vmatpush2.msra.mxu0 0.0
    %314 = vmatprep.subr.mxu0 0.0
    %315 = vmatpush2.msra.mxu0 0.0
    %316 = vmatprep.subr.mxu0 0.0
    %317 = vmatpush2.msra.mxu0 0.0
    %318 = vmatprep.subr.mxu0 0.0
    %319 = vmatpush2.msra.mxu0 0.0
    %320 = vmatprep.subr.mxu0 0.0
    %321 = vmatpush2.msra.mxu0 0.0
    %322 = vmatprep.subr.mxu0 0.0
    %323 = vmatpush2.msra.mxu0 0.0
    %324 = vmatprep.subr.mxu0 0.0
    %325 = vmatpush2.msra.mxu0 0.0
    %326 = vmatprep.subr.mxu0 0.0
    %327 = vmatpush2.msra.mxu0 0.0
    %328 = vmatprep.subr.mxu0 0.0
    %329 = vmatpush2.msra.mxu0 0.0
    %330 = vmatprep.subr.mxu0 0.0
    %331 = vmatpush2.msra.mxu0 0.0
    %332 = vmatprep.mubr.f32.mxu0 0.0
    %333 = vmatmul.mubr.f32.gmra.mxu0 %v265
    %v334 = vpop.f32.mrf.mxu0
    %v335 = vadd.f32 0.0, %v334
    %v336 = vpop.f32.mrf.mxu0
    %337 = vdwg.mxu0
    %v338 = vmul.f32 %v335, 2.0
    %v339 = vsub.f32 %v338, %v55
    %v340 = vld [vmem:[%s2] sm:$0xff]
    %vm341 = vcmask 195584
    %v343 = vsel %vm341, %v340, 0
    %345 = vmatprep.subr.mxu0 0.0
    %346 = vmatpush1.msra.mxu0 0.0
    %347 = vmatprep.subr.mxu0 0.0
    %348 = vmatpush1.msra.mxu0 0.0
    %349 = vmatprep.subr.mxu0 0.0
    %350 = vmatpush1.msra.mxu0 0.0
    %351 = vmatprep.subr.mxu0 0.0
    %352 = vmatpush1.msra.mxu0 0.0
    %353 = vmatprep.subr.mxu0 0.0
    %354 = vmatpush1.msra.mxu0 0.0
    %355 = vmatprep.subr.mxu0 0.0
    %356 = vmatpush1.msra.mxu0 0.0
    %357 = vmatprep.subr.mxu0 0.0
    %358 = vmatpush1.msra.mxu0 0.0
    %359 = vmatprep.subr.mxu0 0.0
    %360 = vmatpush1.msra.mxu0 0.0
    %361 = vmatprep.subr.mxu0 0.0
    %362 = vmatpush1.msra.mxu0 0.0
    %363 = vmatprep.subr.mxu0 0.0
    %364 = vmatpush1.msra.mxu0 0.0
    %365 = vmatprep.subr.mxu0 0.0
    %366 = vmatpush1.msra.mxu0 0.0
    %367 = vmatprep.subr.mxu0 0.0
    %368 = vmatpush1.msra.mxu0 0.0
    %369 = vmatprep.subr.mxu0 0.0
    %370 = vmatpush1.msra.mxu0 0.0
    %371 = vmatprep.subr.mxu0 %v339
    %372 = vmatpush1.msra.mxu0 %v197
    %373 = vmatprep.subr.mxu0 %v265
    %374 = vmatpush1.msra.mxu0 %v123
    %375 = vmatprep.subr.mxu0 %v55
    %376 = vmatpush1.msra.mxu0 %v54
    %377 = vmatprep.subr.mxu0 0.0
    %378 = vmatpush2.msra.mxu0 0.0
    %379 = vmatprep.subr.mxu0 0.0
    %380 = vmatpush2.msra.mxu0 0.0
    %381 = vmatprep.subr.mxu0 0.0
    %382 = vmatpush2.msra.mxu0 0.0
    %383 = vmatprep.subr.mxu0 0.0
    %384 = vmatpush2.msra.mxu0 0.0
    %385 = vmatprep.subr.mxu0 0.0
    %386 = vmatpush2.msra.mxu0 0.0
    %387 = vmatprep.subr.mxu0 0.0
    %388 = vmatpush2.msra.mxu0 0.0
    %389 = vmatprep.subr.mxu0 0.0
    %390 = vmatpush2.msra.mxu0 0.0
    %391 = vmatprep.subr.mxu0 0.0
    %392 = vmatpush2.msra.mxu0 0.0
    %393 = vmatprep.subr.mxu0 0.0
    %394 = vmatpush2.msra.mxu0 0.0
    %395 = vmatprep.subr.mxu0 0.0
    %396 = vmatpush2.msra.mxu0 0.0
    %397 = vmatprep.subr.mxu0 0.0
    %398 = vmatpush2.msra.mxu0 0.0
    %399 = vmatprep.subr.mxu0 0.0
    %400 = vmatpush2.msra.mxu0 0.0
    %401 = vmatprep.subr.mxu0 0.0
    %402 = vmatpush2.msra.mxu0 0.0
    %403 = vmatprep.subr.mxu0 0.0
    %404 = vmatpush2.msra.mxu0 0.0
    %405 = vmatprep.subr.mxu0 0.0
    %406 = vmatpush2.msra.mxu0 0.0
    %407 = vmatprep.subr.mxu0 0.0
    %408 = vmatpush2.msra.mxu0 0.0
    %409 = vmatprep.mubr.f32.mxu0 0.0
    %410 = vmatmul.mubr.f32.gmra.mxu0 %v343
    %v411 = vpop.f32.mrf.mxu0
    %v412 = vadd.f32 0.0, %v411
    %v413 = vpop.f32.mrf.mxu0
    %v414 = vadd.f32 0.0, %v413
    %415 = vdwg.mxu0
    %v416 = vld [vmem:[%s3] sm:$0xff]
    %v417 = vld [vmem:[%s3 + $0x8] sm:$0xff]
    %v418 = vadd.f32 %v412, %v414
    %419 = vadd.xlane.f32.xlu0 %v418
    %v420 = vpop.xlane.xlu0 %419
    %v421 = vmul.f32 %v420, 0.00390625
    %v422 = vsub.f32 %v412, %v421
    %v423 = vsub.f32 %v414, %v421
    %v424 = vmul.f32 %v422, %v422
    %v425 = vmul.f32 %v423, %v423
    %v426 = vadd.f32 %v424, %v425
    %427 = vadd.xlane.f32.xlu0 %v426
    %v428 = vpop.xlane.xlu0 %427
    %v429 = vmul.f32 %v428, 0.00390625
    %v430 = vadd.f32 %v429, 1e-05
    %v431 = vrsqrt.pop %v430
    %v432 = vmul.f32 %v431, %v416
    %v433 = vmul.f32 %v421, %v432
    %v434 = vsub.f32 %v417, %v433
    %436 = vset.pattern.permute.xlu0 0
    %437 = vperm.xlu0 %436, %v432
    %v438 = vpop.permute.xlu0 %437
    %v440 = vmul.f32 %v412, %v438
    %v441 = vmul.f32 %v414, %v438
    %443 = vset.pattern.permute.xlu0 0
    %444 = vperm.xlu0 %443, %v434
    %v445 = vpop.permute.xlu0 %444
    %v447 = vadd.f32 %v440, %v445
    %v448 = vadd.f32 %v441, %v445
    %v449 = vmax.f32 %v447, 0.0
    %v450 = vmax.f32 %v448, 0.0
    %451 = vmatprep.subr.mxu0 0.0
    %452 = vmatpush1.msra.mxu0 %v53
    %453 = vmatprep.subr.mxu0 0.0
    %454 = vmatpush1.msra.mxu0 %v52
    %455 = vmatprep.subr.mxu0 0.0
    %456 = vmatpush1.msra.mxu0 %v51
    %457 = vmatprep.subr.mxu0 0.0
    %458 = vmatpush1.msra.mxu0 %v50
    %459 = vmatprep.subr.mxu0 0.0
    %460 = vmatpush1.msra.mxu0 %v49
    %461 = vmatprep.subr.mxu0 0.0
    %462 = vmatpush1.msra.mxu0 %v48
    %463 = vmatprep.subr.mxu0 0.0
    %464 = vmatpush1.msra.mxu0 %v47
    %465 = vmatprep.subr.mxu0 0.0
    %466 = vmatpush1.msra.mxu0 %v46
    %467 = vmatprep.subr.mxu0 0.0
    %468 = vmatpush1.msra.mxu0 %v45
    %469 = vmatprep.subr.mxu0 0.0
    %470 = vmatpush1.msra.mxu0 %v44
    %471 = vmatprep.subr.mxu0 0.0
    %472 = vmatpush1.msra.mxu0 %v43
    %473 = vmatprep.subr.mxu0 0.0
    %474 = vmatpush1.msra.mxu0 %v42
    %475 = vmatprep.subr.mxu0 0.0
    %476 = vmatpush1.msra.mxu0 %v41
    %477 = vmatprep.subr.mxu0 0.0
    %478 = vmatpush1.msra.mxu0 %v40
    %479 = vmatprep.subr.mxu0 0.0
    %480 = vmatpush1.msra.mxu0 %v39
    %481 = vmatprep.subr.mxu0 0.0
    %482 = vmatpush1.msra.mxu0 %v38
    %483 = vmatprep.subr.mxu0 0.0
    %484 = vmatpush2.msra.mxu0 0.0
    %485 = vmatprep.subr.mxu0 0.0
    %486 = vmatpush2.msra.mxu0 0.0
    %487 = vmatprep.subr.mxu0 0.0
    %488 = vmatpush2.msra.mxu0 0.0
    %489 = vmatprep.subr.mxu0 0.0
    %490 = vmatpush2.msra.mxu0 0.0
    %491 = vmatprep.subr.mxu0 0.0
    %492 = vmatpush2.msra.mxu0 0.0
    %493 = vmatprep.subr.mxu0 0.0
    %494 = vmatpush2.msra.mxu0 0.0
    %495 = vmatprep.subr.mxu0 0.0
    %496 = vmatpush2.msra.mxu0 0.0
    %497 = vmatprep.subr.mxu0 0.0
    %498 = vmatpush2.msra.mxu0 0.0
    %499 = vmatprep.subr.mxu0 0.0
    %500 = vmatpush2.msra.mxu0 0.0
    %501 = vmatprep.subr.mxu0 0.0
    %502 = vmatpush2.msra.mxu0 0.0
    %503 = vmatprep.subr.mxu0 0.0
    %504 = vmatpush2.msra.mxu0 0.0
    %505 = vmatprep.subr.mxu0 0.0
    %506 = vmatpush2.msra.mxu0 0.0
    %507 = vmatprep.subr.mxu0 0.0
    %508 = vmatpush2.msra.mxu0 0.0
    %509 = vmatprep.subr.mxu0 0.0
    %510 = vmatpush2.msra.mxu0 0.0
    %511 = vmatprep.subr.mxu0 0.0
    %512 = vmatpush2.msra.mxu0 0.0
    %513 = vmatprep.subr.mxu0 0.0
    %514 = vmatpush2.msra.mxu0 0.0
    %515 = vmatprep.mubr.f32.mxu0 0.0
    %516 = vmatmul.mubr.f32.gmra.mxu0 %v449
    %v517 = vpop.f32.mrf.mxu0
    %v518 = vadd.f32 0.0, %v517
    %v519 = vpop.f32.mrf.mxu0
    %520 = vdwg.mxu0
    %521 = vmatprep.subr.mxu0 0.0
    %522 = vmatpush1.msra.mxu0 %v53
    %523 = vmatprep.subr.mxu0 0.0
    %524 = vmatpush1.msra.mxu0 %v52
    %525 = vmatprep.subr.mxu0 0.0
    %526 = vmatpush1.msra.mxu0 %v51
    %527 = vmatprep.subr.mxu0 0.0
    %528 = vmatpush1.msra.mxu0 %v50
    %529 = vmatprep.subr.mxu0 0.0
    %530 = vmatpush1.msra.mxu0 %v49
    %531 = vmatprep.subr.mxu0 0.0
    %532 = vmatpush1.msra.mxu0 %v48
    %533 = vmatprep.subr.mxu0 0.0
    %534 = vmatpush1.msra.mxu0 %v47
    %535 = vmatprep.subr.mxu0 0.0
    %536 = vmatpush1.msra.mxu0 %v46
    %537 = vmatprep.subr.mxu0 0.0
    %538 = vmatpush1.msra.mxu0 %v45
    %539 = vmatprep.subr.mxu0 0.0
    %540 = vmatpush1.msra.mxu0 %v44
    %541 = vmatprep.subr.mxu0 0.0
    %542 = vmatpush1.msra.mxu0 %v43
    %543 = vmatprep.subr.mxu0 0.0
    %544 = vmatpush1.msra.mxu0 %v42
    %545 = vmatprep.subr.mxu0 0.0
    %546 = vmatpush1.msra.mxu0 %v41
    %547 = vmatprep.subr.mxu0 0.0
    %548 = vmatpush1.msra.mxu0 %v40
    %549 = vmatprep.subr.mxu0 0.0
    %550 = vmatpush1.msra.mxu0 %v39
    %551 = vmatprep.subr.mxu0 0.0
    %552 = vmatpush1.msra.mxu0 %v38
    %553 = vmatprep.subr.mxu0 0.0
    %554 = vmatpush2.msra.mxu0 0.0
    %555 = vmatprep.subr.mxu0 0.0
    %556 = vmatpush2.msra.mxu0 0.0
    %557 = vmatprep.subr.mxu0 0.0
    %558 = vmatpush2.msra.mxu0 0.0
    %559 = vmatprep.subr.mxu0 0.0
    %560 = vmatpush2.msra.mxu0 0.0
    %561 = vmatprep.subr.mxu0 0.0
    %562 = vmatpush2.msra.mxu0 0.0
    %563 = vmatprep.subr.mxu0 0.0
    %564 = vmatpush2.msra.mxu0 0.0
    %565 = vmatprep.subr.mxu0 0.0
    %566 = vmatpush2.msra.mxu0 0.0
    %567 = vmatprep.subr.mxu0 0.0
    %568 = vmatpush2.msra.mxu0 0.0
    %569 = vmatprep.subr.mxu0 0.0
    %570 = vmatpush2.msra.mxu0 0.0
    %571 = vmatprep.subr.mxu0 0.0
    %572 = vmatpush2.msra.mxu0 0.0
    %573 = vmatprep.subr.mxu0 0.0
    %574 = vmatpush2.msra.mxu0 0.0
    %575 = vmatprep.subr.mxu0 0.0
    %576 = vmatpush2.msra.mxu0 0.0
    %577 = vmatprep.subr.mxu0 0.0
    %578 = vmatpush2.msra.mxu0 0.0
    %579 = vmatprep.subr.mxu0 0.0
    %580 = vmatpush2.msra.mxu0 0.0
    %581 = vmatprep.subr.mxu0 0.0
    %582 = vmatpush2.msra.mxu0 0.0
    %583 = vmatprep.subr.mxu0 0.0
    %584 = vmatpush2.msra.mxu0 0.0
    %585 = vmatprep.mubr.f32.mxu0 0.0
    %586 = vmatmul.mubr.f32.gmra.mxu0 %v518
    %v587 = vpop.f32.mrf.mxu0
    %v588 = vadd.f32 0.0, %v587
    %v589 = vpop.f32.mrf.mxu0
    %590 = vdwg.mxu0
    %v591 = vmul.f32 %v588, 2.0
    %v592 = vsub.f32 %v591, %v449
    %593 = vmatprep.subr.mxu0 0.0
    %594 = vmatpush1.msra.mxu0 %v53
    %595 = vmatprep.subr.mxu0 0.0
    %596 = vmatpush1.msra.mxu0 %v52
    %597 = vmatprep.subr.mxu0 0.0
    %598 = vmatpush1.msra.mxu0 %v51
    %599 = vmatprep.subr.mxu0 0.0
    %600 = vmatpush1.msra.mxu0 %v50
    %601 = vmatprep.subr.mxu0 0.0
    %602 = vmatpush1.msra.mxu0 %v49
    %603 = vmatprep.subr.mxu0 0.0
    %604 = vmatpush1.msra.mxu0 %v48
    %605 = vmatprep.subr.mxu0 0.0
    %606 = vmatpush1.msra.mxu0 %v47
    %607 = vmatprep.subr.mxu0 0.0
    %608 = vmatpush1.msra.mxu0 %v46
    %609 = vmatprep.subr.mxu0 0.0
    %610 = vmatpush1.msra.mxu0 %v45
    %611 = vmatprep.subr.mxu0 0.0
    %612 = vmatpush1.msra.mxu0 %v44
    %613 = vmatprep.subr.mxu0 0.0
    %614 = vmatpush1.msra.mxu0 %v43
    %615 = vmatprep.subr.mxu0 0.0
    %616 = vmatpush1.msra.mxu0 %v42
    %617 = vmatprep.subr.mxu0 0.0
    %618 = vmatpush1.msra.mxu0 %v41
    %619 = vmatprep.subr.mxu0 0.0
    %620 = vmatpush1.msra.mxu0 %v40
    %621 = vmatprep.subr.mxu0 0.0
    %622 = vmatpush1.msra.mxu0 %v39
    %623 = vmatprep.subr.mxu0 0.0
    %624 = vmatpush1.msra.mxu0 %v38
    %625 = vmatprep.subr.mxu0 0.0
    %626 = vmatpush2.msra.mxu0 0.0
    %627 = vmatprep.subr.mxu0 0.0
    %628 = vmatpush2.msra.mxu0 0.0
    %629 = vmatprep.subr.mxu0 0.0
    %630 = vmatpush2.msra.mxu0 0.0
    %631 = vmatprep.subr.mxu0 0.0
    %632 = vmatpush2.msra.mxu0 0.0
    %633 = vmatprep.subr.mxu0 0.0
    %634 = vmatpush2.msra.mxu0 0.0
    %635 = vmatprep.subr.mxu0 0.0
    %636 = vmatpush2.msra.mxu0 0.0
    %637 = vmatprep.subr.mxu0 0.0
    %638 = vmatpush2.msra.mxu0 0.0
    %639 = vmatprep.subr.mxu0 0.0
    %640 = vmatpush2.msra.mxu0 0.0
    %641 = vmatprep.subr.mxu0 0.0
    %642 = vmatpush2.msra.mxu0 0.0
    %643 = vmatprep.subr.mxu0 0.0
    %644 = vmatpush2.msra.mxu0 0.0
    %645 = vmatprep.subr.mxu0 0.0
    %646 = vmatpush2.msra.mxu0 0.0
    %647 = vmatprep.subr.mxu0 0.0
    %648 = vmatpush2.msra.mxu0 0.0
    %649 = vmatprep.subr.mxu0 0.0
    %650 = vmatpush2.msra.mxu0 0.0
    %651 = vmatprep.subr.mxu0 0.0
    %652 = vmatpush2.msra.mxu0 0.0
    %653 = vmatprep.subr.mxu0 0.0
    %654 = vmatpush2.msra.mxu0 0.0
    %655 = vmatprep.subr.mxu0 0.0
    %656 = vmatpush2.msra.mxu0 0.0
    %657 = vmatprep.mubr.f32.mxu0 0.0
    %658 = vmatmul.mubr.f32.gmra.mxu0 %v450
    %v659 = vpop.f32.mrf.mxu0
    %v660 = vadd.f32 0.0, %v659
    %v661 = vpop.f32.mrf.mxu0
    %662 = vdwg.mxu0
    %663 = vmatprep.subr.mxu0 0.0
    %664 = vmatpush1.msra.mxu0 %v53
    %665 = vmatprep.subr.mxu0 0.0
    %666 = vmatpush1.msra.mxu0 %v52
    %667 = vmatprep.subr.mxu0 0.0
    %668 = vmatpush1.msra.mxu0 %v51
    %669 = vmatprep.subr.mxu0 0.0
    %670 = vmatpush1.msra.mxu0 %v50
    %671 = vmatprep.subr.mxu0 0.0
    %672 = vmatpush1.msra.mxu0 %v49
    %673 = vmatprep.subr.mxu0 0.0
    %674 = vmatpush1.msra.mxu0 %v48
    %675 = vmatprep.subr.mxu0 0.0
    %676 = vmatpush1.msra.mxu0 %v47
    %677 = vmatprep.subr.mxu0 0.0
    %678 = vmatpush1.msra.mxu0 %v46
    %679 = vmatprep.subr.mxu0 0.0
    %680 = vmatpush1.msra.mxu0 %v45
    %681 = vmatprep.subr.mxu0 0.0
    %682 = vmatpush1.msra.mxu0 %v44
    %683 = vmatprep.subr.mxu0 0.0
    %684 = vmatpush1.msra.mxu0 %v43
    %685 = vmatprep.subr.mxu0 0.0
    %686 = vmatpush1.msra.mxu0 %v42
    %687 = vmatprep.subr.mxu0 0.0
    %688 = vmatpush1.msra.mxu0 %v41
    %689 = vmatprep.subr.mxu0 0.0
    %690 = vmatpush1.msra.mxu0 %v40
    %691 = vmatprep.subr.mxu0 0.0
    %692 = vmatpush1.msra.mxu0 %v39
    %693 = vmatprep.subr.mxu0 0.0
    %694 = vmatpush1.msra.mxu0 %v38
    %695 = vmatprep.subr.mxu0 0.0
    %696 = vmatpush2.msra.mxu0 0.0
    %697 = vmatprep.subr.mxu0 0.0
    %698 = vmatpush2.msra.mxu0 0.0
    %699 = vmatprep.subr.mxu0 0.0
    %700 = vmatpush2.msra.mxu0 0.0
    %701 = vmatprep.subr.mxu0 0.0
    %702 = vmatpush2.msra.mxu0 0.0
    %703 = vmatprep.subr.mxu0 0.0
    %704 = vmatpush2.msra.mxu0 0.0
    %705 = vmatprep.subr.mxu0 0.0
    %706 = vmatpush2.msra.mxu0 0.0
    %707 = vmatprep.subr.mxu0 0.0
    %708 = vmatpush2.msra.mxu0 0.0
    %709 = vmatprep.subr.mxu0 0.0
    %710 = vmatpush2.msra.mxu0 0.0
    %711 = vmatprep.subr.mxu0 0.0
    %712 = vmatpush2.msra.mxu0 0.0
    %713 = vmatprep.subr.mxu0 0.0
    %714 = vmatpush2.msra.mxu0 0.0
    %715 = vmatprep.subr.mxu0 0.0
    %716 = vmatpush2.msra.mxu0 0.0
    %717 = vmatprep.subr.mxu0 0.0
    %718 = vmatpush2.msra.mxu0 0.0
    %719 = vmatprep.subr.mxu0 0.0
    %720 = vmatpush2.msra.mxu0 0.0
    %721 = vmatprep.subr.mxu0 0.0
    %722 = vmatpush2.msra.mxu0 0.0
    %723 = vmatprep.subr.mxu0 0.0
    %724 = vmatpush2.msra.mxu0 0.0
    %725 = vmatprep.subr.mxu0 0.0
    %726 = vmatpush2.msra.mxu0 0.0
    %727 = vmatprep.mubr.f32.mxu0 0.0
    %728 = vmatmul.mubr.f32.gmra.mxu0 %v660
    %v729 = vpop.f32.mrf.mxu0
    %v730 = vadd.f32 0.0, %v729
    %v731 = vpop.f32.mrf.mxu0
    %732 = vdwg.mxu0
    %v733 = vmul.f32 %v730, 2.0
    %v734 = vsub.f32 %v733, %v450
    %v735 = vld [vmem:[%s4] sm:$0xff]
    %v737 = vsel %vm341, %v735, 0
    %739 = vmatprep.subr.mxu0 0.0
    %740 = vmatpush1.msra.mxu0 0.0
    %741 = vmatprep.subr.mxu0 0.0
    %742 = vmatpush1.msra.mxu0 0.0
    %743 = vmatprep.subr.mxu0 0.0
    %744 = vmatpush1.msra.mxu0 0.0
    %745 = vmatprep.subr.mxu0 0.0
    %746 = vmatpush1.msra.mxu0 0.0
    %747 = vmatprep.subr.mxu0 0.0
    %748 = vmatpush1.msra.mxu0 0.0
    %749 = vmatprep.subr.mxu0 0.0
    %750 = vmatpush1.msra.mxu0 0.0
    %751 = vmatprep.subr.mxu0 0.0
    %752 = vmatpush1.msra.mxu0 0.0
    %753 = vmatprep.subr.mxu0 0.0
    %754 = vmatpush1.msra.mxu0 0.0
    %755 = vmatprep.subr.mxu0 0.0
    %756 = vmatpush1.msra.mxu0 0.0
    %757 = vmatprep.subr.mxu0 0.0
    %758 = vmatpush1.msra.mxu0 0.0
    %759 = vmatprep.subr.mxu0 0.0
    %760 = vmatpush1.msra.mxu0 0.0
    %761 = vmatprep.subr.mxu0 0.0
    %762 = vmatpush1.msra.mxu0 0.0
    %763 = vmatprep.subr.mxu0 0.0
    %764 = vmatpush1.msra.mxu0 0.0
    %765 = vmatprep.subr.mxu0 %v734
    %766 = vmatpush1.msra.mxu0 %v592
    %767 = vmatprep.subr.mxu0 %v660
    %768 = vmatpush1.msra.mxu0 %v518
    %769 = vmatprep.subr.mxu0 %v450
    %770 = vmatpush1.msra.mxu0 %v449
    %771 = vmatprep.subr.mxu0 0.0
    %772 = vmatpush2.msra.mxu0 0.0
    %773 = vmatprep.subr.mxu0 0.0
    %774 = vmatpush2.msra.mxu0 0.0
    %775 = vmatprep.subr.mxu0 0.0
    %776 = vmatpush2.msra.mxu0 0.0
    %777 = vmatprep.subr.mxu0 0.0
    %778 = vmatpush2.msra.mxu0 0.0
    %779 = vmatprep.subr.mxu0 0.0
    %780 = vmatpush2.msra.mxu0 0.0
    %781 = vmatprep.subr.mxu0 0.0
    %782 = vmatpush2.msra.mxu0 0.0
    %783 = vmatprep.subr.mxu0 0.0
    %784 = vmatpush2.msra.mxu0 0.0
    %785 = vmatprep.subr.mxu0 0.0
    %786 = vmatpush2.msra.mxu0 0.0
    %787 = vmatprep.subr.mxu0 0.0
    %788 = vmatpush2.msra.mxu0 0.0
    %789 = vmatprep.subr.mxu0 0.0
    %790 = vmatpush2.msra.mxu0 0.0
    %791 = vmatprep.subr.mxu0 0.0
    %792 = vmatpush2.msra.mxu0 0.0
    %793 = vmatprep.subr.mxu0 0.0
    %794 = vmatpush2.msra.mxu0 0.0
    %795 = vmatprep.subr.mxu0 0.0
    %796 = vmatpush2.msra.mxu0 0.0
    %797 = vmatprep.subr.mxu0 0.0
    %798 = vmatpush2.msra.mxu0 0.0
    %799 = vmatprep.subr.mxu0 0.0
    %800 = vmatpush2.msra.mxu0 0.0
    %801 = vmatprep.subr.mxu0 0.0
    %802 = vmatpush2.msra.mxu0 0.0
    %803 = vmatprep.mubr.f32.mxu0 0.0
    %804 = vmatmul.mubr.f32.gmra.mxu0 %v737
    %v805 = vpop.f32.mrf.mxu0
    %v806 = vadd.f32 0.0, %v805
    %v807 = vpop.f32.mrf.mxu0
    %v808 = vadd.f32 0.0, %v807
    %809 = vdwg.mxu0
    %v810 = vld [vmem:[%s5] sm:$0xff]
    %v811 = vld [vmem:[%s5 + $0x8] sm:$0xff]
    %v812 = vadd.f32 %v806, %v808
    %813 = vadd.xlane.f32.xlu0 %v812
    %v814 = vpop.xlane.xlu0 %813
    %v815 = vmul.f32 %v814, 0.00390625
    %v816 = vsub.f32 %v806, %v815
    %v817 = vsub.f32 %v808, %v815
    %v818 = vmul.f32 %v816, %v816
    %v819 = vmul.f32 %v817, %v817
    %v820 = vadd.f32 %v818, %v819
    %821 = vadd.xlane.f32.xlu0 %v820
    %v822 = vpop.xlane.xlu0 %821
    %v823 = vmul.f32 %v822, 0.00390625
    %v824 = vadd.f32 %v823, 1e-05
    %v825 = vrsqrt.pop %v824
    %v826 = vmul.f32 %v825, %v810
    %v827 = vmul.f32 %v815, %v826
    %v828 = vsub.f32 %v811, %v827
    %830 = vset.pattern.permute.xlu0 0
    %831 = vperm.xlu0 %830, %v826
    %v832 = vpop.permute.xlu0 %831
    %v834 = vmul.f32 %v806, %v832
    %v835 = vmul.f32 %v808, %v832
    %837 = vset.pattern.permute.xlu0 0
    %838 = vperm.xlu0 %837, %v828
    %v839 = vpop.permute.xlu0 %838
    %v841 = vadd.f32 %v834, %v839
    %v842 = vadd.f32 %v835, %v839
    %v843 = vmax.f32 %v841, 0.0
    %v844 = vmax.f32 %v842, 0.0
    %845 = vst [vmem:[#allocation5] sm:$0xff] %v843
    %846 = vst [vmem:[#allocation5 + $0x8] sm:$0xff] %v844
    // Predicated region
    $region30: #{tpu_custom_call.1} parent=1 // pred_check
      _
    $region31: #{tpu_custom_call.1} parent=1 // pred_check_branch
      %848 = sbr.rel (0) target = $region33
    $region32: #{tpu_custom_call.1} parent=1 // pred_region
      %s850 = ssub.s32 256, 256
      %851 = vsyncadd [#allocation4], %s850
      %s853 = sshll.u32 [#allocation5], 4
      %s854 = int_to_ptr.vmem [resolvable:$true] %s853
      %856 = dma.vmem_to_hbm [thread:$0]  %s854, 256, %s6, [#allocation4]
    $region33: #{tpu_custom_call.1} parent=1 // pred_fallthru
      _
    // Predicated region
    $region34: #{tpu_custom_call.1} parent=1 // pred_check
      _
    $region35: #{tpu_custom_call.1} parent=1 // pred_check_branch
      %858 = sbr.rel (0) target = $region37
    $region36: #{tpu_custom_call.1} parent=1 // pred_region
      %859 = dma.done [#allocation4], 256
    $region37: #{tpu_custom_call.1} parent=1 // pred_fallthru
      _
    %860 = vsyncpa [#allocation3], 1
    %861 = vsyncpa [#allocation4], 1

</llo_original>
